<compile_context>
chip_gen: v7x
topology: tpu7x:2x2x1
jax: 0.10.0
libtpu: 0.0.40
codegen_flags: <defaults>
</compile_context>

<pallas_src>
import jax
import jax.numpy as jnp
from jax.experimental import pallas as pl
from jax.experimental.pallas import tpu as pltpu

LANE = 128
NEG_LARGE = -1e30  # kills padded class columns in softmax (exp underflows to 0)


def _round_up(n: int, m: int) -> int:
    return ((n + m - 1) // m) * m


# ----------------------------------------------------------------------------
# Pallas kernel: whole forward pass for one batch tile.
# ----------------------------------------------------------------------------
def quantile_net_kernel(
    x_ref,
    w1, b1, w2, b2, w3, b3, w4, b4, w5, b5,
    o_ref,
):
    compute_dtype = w1.dtype
    h = x_ref[...]

    # 4x [Linear (BN + bias folded) -> ReLU]; Dropout is identity in eval mode.
    for w, b in ((w1, b1), (w2, b2), (w3, b3), (w4, b4)):
        acc = jnp.dot(h, w[...], preferred_element_type=jnp.float32) + b[...]
        h = jnp.maximum(acc, 0.0).astype(compute_dtype)

    # Final Linear -> softmax over the (padded, lane-dense) class axis, in f32.
    # Padded class columns carry a -1e30 bias -> probability exactly 0.
    logits = jnp.dot(h, w5[...], preferred_element_type=jnp.float32) + b5[...]
    m = jnp.max(logits, axis=1, keepdims=True)
    e = jnp.exp(logits - m)
    denom = jnp.sum(e, axis=1, keepdims=True)
    o_ref[...] = (e * pl.reciprocal(denom, approx=True)).astype(o_ref.dtype)


# ----------------------------------------------------------------------------
# Raw parameter construction (mirrors torch __init__ + _init_weights, eval mode).
# ----------------------------------------------------------------------------
def init_raw_params(key, input_dim, hidden_dims, num_classes):
    """Xavier-uniform weights (stored as (in, out)), zero biases.

    Hidden layers carry BatchNorm1d eval-mode parameters/stats.  At torch init
    these are (gamma=1, beta=0, mean=0, var=1); we use non-trivial deterministic
    values so the BN fold is actually exercised (as for a trained model in eval()).
    """
    dims = list(hidden_dims) + [num_classes]
    raw = []
    prev = input_dim
    keys = jax.random.split(key, len(dims))
    for i, d in enumerate(dims):
        kw, kg, kb, km, kv = jax.random.split(keys[i], 5)
        limit = jnp.sqrt(6.0 / (prev + d)).astype(jnp.float32)
        W = jax.random.uniform(kw, (prev, d), jnp.float32, -limit, limit)
        b = jnp.zeros((1, d), jnp.float32)  # torch.nn.init.constant_(bias, 0)
        if i < len(dims) - 1:
            gamma = 1.0 + 0.1 * jax.random.normal(kg, (1, d), jnp.float32)
            beta = 0.1 * jax.random.normal(kb, (1, d), jnp.float32)
            mean = 0.1 * jax.random.normal(km, (1, d), jnp.float32)
            var = jax.random.uniform(kv, (1, d), jnp.float32, 0.5, 1.5)
            raw.append((W, b, gamma, beta, mean, var))
        else:
            raw.append((W, b))
        prev = d
    return raw


# ----------------------------------------------------------------------------
# Fold BN into Linear, pad output dims to multiples of 128 (lane-dense), keep the
# input dim unpadded (rounded to the 8-sublane granule only if needed), and cast
# weights to the compute dtype once.  Biases stay f32 for the epilogue.
# ----------------------------------------------------------------------------
def fold_and_pad_params(raw, bn_eps=1e-5, lane=LANE, compute_dtype=jnp.bfloat16):
    kparams = []
    n = len(raw)
    prev_cols = None
    for i, layer in enumerate(raw):
        if i < n - 1:
            W, b, gamma, beta, mean, var = layer
            scale = gamma / jnp.sqrt(var + bn_eps)       # (1, out)
            shift = beta - mean * scale                  # (1, out)
            Wf = W * scale                               # broadcast over rows
            bf = b * scale + shift
            fill = 0.0                                   # ReLU(0)=0 -> padded cols inert
        else:
            W, b = layer
            Wf, bf = W, b
            fill = NEG_LARGE                             # padded classes -> prob 0
        # Layer-1 rows: input dim stays unpadded (just 8-sublane granule); later
        # layers' rows must match the previous layer's 128-padded output.
        rows = _round_up(W.shape[0], 8) if i == 0 else prev_cols
        cols = _round_up(W.shape[1], lane)
        Wp = jnp.zeros((rows, cols), jnp.float32).at[: W.shape[0], : W.shape[1]].set(Wf)
        bp = jnp.full((1, cols), fill, jnp.float32).at[:, : W.shape[1]].set(bf)
        kparams.extend([Wp.astype(compute_dtype), bp])   # weight in compute dtype, bias f32
        prev_cols = cols
    return kparams


# ----------------------------------------------------------------------------
# Wrapper: builds BlockSpecs / grid and calls the kernel.
# ----------------------------------------------------------------------------
def quantile_net_forward(x, kparams, num_classes, *, batch_tile=512,
                         out_dtype=None, num_tensorcores=1,
                         vmem_limit_bytes=None):
    """x: (B, input_dim) array. kparams: output of fold_and_pad_params.

    batch_tile: sweep 256-1024 (512 default).  On v5e either keep <=512 or pass
    vmem_limit_bytes explicitly (default scoped VMEM there is 16 MiB).
    num_tensorcores=2 on v7x keeps the parallel grid at >=2 steps.
    """
    B, D = x.shape
    compute_dtype = kparams[0].dtype     # weights carry the compute dtype
    out_dtype = compute_dtype if out_dtype is None else out_dtype
    Din_p = kparams[0].shape[0]          # (un)padded input dim
    C_p = kparams[-1].shape[1]           # padded class count (lane-dense)

    sub = 16 if compute_dtype == jnp.bfloat16 else 8   # full bf16 sublane tiles
    assert batch_tile % sub == 0
    tile = min(batch_tile, _round_up(B, sub))
    if num_tensorcores > 1 and B >= 2 * sub:
        # v7x (2 TCs/chip): cap the tile so the parallel grid has >=2 steps.
        tile = min(tile, _round_up(-(-_round_up(B, sub) // 2), sub))
        # TODO(synk): also force an even grid-step count for perfect TC balance.
    Bp = _round_up(B, tile)

    # Cast once; pad only when there is a ragged batch tail or an input-dim pad.
    xc = x.astype(compute_dtype)
    if Bp == B and Din_p == D:
        xp = xc
    else:
        xp = jnp.zeros((Bp, Din_p), compute_dtype).at[:B, :D].set(xc)

    x_spec = pl.BlockSpec((tile, Din_p), lambda i: (i, 0))
    # Params are fully resident with a constant block index -> single-buffer them.
    param_specs = [
        pl.BlockSpec(p.shape, lambda i: (0, 0), pipeline_mode=pl.Buffered(1))
        for p in kparams
    ]
    out_spec = pl.BlockSpec((tile, C_p), lambda i: (i, 0))

    cp_kwargs = dict(dimension_semantics=("parallel",))
    if vmem_limit_bytes is not None:
        cp_kwargs["vmem_limit_bytes"] = vmem_limit_bytes

    out = pl.pallas_call(
        quantile_net_kernel,
        out_shape=jax.ShapeDtypeStruct((Bp, C_p), out_dtype),
        grid_spec=pltpu.PrefetchScalarGridSpec(
            num_scalar_prefetch=0,
            grid=(Bp // tile,),
            in_specs=[x_spec] + param_specs,
            out_specs=out_spec,
        ),
        compiler_params=pltpu.CompilerParams(**cp_kwargs),
    )(xp, *kparams)

    # TODO(synk): if the consumer can take the padded (Bp, C_p) slab (ignoring
    # rows >= B and columns >= num_classes), return `out` directly to skip this
    # extra XLA slice pass over HBM.
    return out[:B, :num_classes]


# ----------------------------------------------------------------------------
# Pure-JAX reference (unfolded math, eval-mode BN) for a sanity check.
# ----------------------------------------------------------------------------
def reference_forward(x, raw, bn_eps=1e-5):
    h = x
    for layer in raw[:-1]:
        W, b, gamma, beta, mean, var = layer
        h = h @ W + b
        h = (h - mean) / jnp.sqrt(var + bn_eps) * gamma + beta
        h = jnp.maximum(h, 0.0)
    W, b = raw[-1]
    logits = h @ W + b
    return jax.nn.softmax(logits, axis=1)


if __name__ == "__main__":
    INPUT_DIM = 32
    HIDDEN_DIMS = [512, 256, 128, 64]
    NUM_CLASSES = 10
    BATCH = 16

    key = jax.random.PRNGKey(0)
    kx, kp = jax.random.split(key)

    x = jax.random.normal(kx, (BATCH, INPUT_DIM), jnp.float32)
    raw = init_raw_params(kp, INPUT_DIM, HIDDEN_DIMS, NUM_CLASSES)
    ref = reference_forward(x, raw)

    # Default bf16 compute path (MXU-native on v5e/v6e/v7x), bf16 output.
    kparams_bf16 = fold_and_pad_params(raw, compute_dtype=jnp.bfloat16)
    probs_bf16 = quantile_net_forward(x, kparams_bf16, NUM_CLASSES)
    probs_bf16 = jax.block_until_ready(probs_bf16)
    assert probs_bf16.shape == (BATCH, NUM_CLASSES)
    assert probs_bf16.dtype == jnp.bfloat16
    assert jnp.allclose(jnp.sum(probs_bf16.astype(jnp.float32), axis=1), 1.0, atol=5e-2)
    assert jnp.allclose(probs_bf16.astype(jnp.float32), ref, atol=5e-2)

    # f32 validation path (exact BN-fold algebra; approx reciprocal -> 5e-3 tol).
    kparams_f32 = fold_and_pad_params(raw, compute_dtype=jnp.float32)
    probs_f32 = quantile_net_forward(x, kparams_f32, NUM_CLASSES,
                                     out_dtype=jnp.float32)
    probs_f32 = jax.block_until_ready(probs_f32)
    assert probs_f32.shape == (BATCH, NUM_CLASSES)
    assert jnp.allclose(jnp.sum(probs_f32, axis=1), 1.0, atol=5e-3)
    assert jnp.allclose(probs_f32, ref, atol=5e-3, rtol=1e-2)

    print("KERNEL_OK")
</pallas_src>

<mosaic_0001>
module attributes {stable_mosaic.version = 11 : i64} {
  func.func @quantile_net_kernel(%arg0: i32, %arg1: memref<16x32xbf16, #tpu.memory_space<vmem>>, %arg2: memref<32x512xbf16, #tpu.memory_space<vmem>>, %arg3: memref<1x512xf32, #tpu.memory_space<vmem>>, %arg4: memref<512x256xbf16, #tpu.memory_space<vmem>>, %arg5: memref<1x256xf32, #tpu.memory_space<vmem>>, %arg6: memref<256x128xbf16, #tpu.memory_space<vmem>>, %arg7: memref<1x128xf32, #tpu.memory_space<vmem>>, %arg8: memref<128x128xbf16, #tpu.memory_space<vmem>>, %arg9: memref<1x128xf32, #tpu.memory_space<vmem>>, %arg10: memref<128x128xbf16, #tpu.memory_space<vmem>>, %arg11: memref<1x128xf32, #tpu.memory_space<vmem>>, %arg12: memref<16x128xbf16, #tpu.memory_space<vmem>>) attributes {dimension_semantics = [#tpu.dimension_semantics<parallel>], iteration_bounds = array<i64: 1>, scalar_prefetch = 0 : i64, scratch_operands = 0 : i64, tpu.core_type = #tpu.core_type<tc>, window_params = [{transform_indices = @transform_0, window_bounds = array<i64: 16, 32>}, {pipeline_mode = #tpu.pipeline_mode<synchronous>, transform_indices = @transform_1, window_bounds = array<i64: 32, 512>}, {pipeline_mode = #tpu.pipeline_mode<synchronous>, transform_indices = @transform_2, window_bounds = array<i64: 1, 512>}, {pipeline_mode = #tpu.pipeline_mode<synchronous>, transform_indices = @transform_3, window_bounds = array<i64: 512, 256>}, {pipeline_mode = #tpu.pipeline_mode<synchronous>, transform_indices = @transform_4, window_bounds = array<i64: 1, 256>}, {pipeline_mode = #tpu.pipeline_mode<synchronous>, transform_indices = @transform_5, window_bounds = array<i64: 256, 128>}, {pipeline_mode = #tpu.pipeline_mode<synchronous>, transform_indices = @transform_6, window_bounds = array<i64: 1, 128>}, {pipeline_mode = #tpu.pipeline_mode<synchronous>, transform_indices = @transform_7, window_bounds = array<i64: 128, 128>}, {pipeline_mode = #tpu.pipeline_mode<synchronous>, transform_indices = @transform_8, window_bounds = array<i64: 1, 128>}, {pipeline_mode = #tpu.pipeline_mode<synchronous>, transform_indices = @transform_9, window_bounds = array<i64: 128, 128>}, {pipeline_mode = #tpu.pipeline_mode<synchronous>, transform_indices = @transform_10, window_bounds = array<i64: 1, 128>}, {transform_indices = @transform_11, window_bounds = array<i64: 16, 128>}]} {
    %c0 = arith.constant 0 : index
    %c0_0 = arith.constant 0 : index
    %0 = vector.load %arg1[%c0, %c0_0] : memref<16x32xbf16, #tpu.memory_space<vmem>>, vector<16x32xbf16>
    %c0_1 = arith.constant 0 : index
    %c0_2 = arith.constant 0 : index
    %1 = vector.load %arg2[%c0_1, %c0_2] : memref<32x512xbf16, #tpu.memory_space<vmem>>, vector<32x512xbf16>
    %cst = arith.constant dense<0.000000e+00> : vector<16x512xf32>
    %2 = tpu.matmul %0, %1, %cst {dimension_numbers = #tpu.dot_dimension_numbers<[1], [0], [0], [1], [0, 0, 1, 1], [], []>} : vector<16x32xbf16>, vector<32x512xbf16>, vector<16x512xf32> -> vector<16x512xf32>
    %c0_3 = arith.constant 0 : index
    %c0_4 = arith.constant 0 : index
    %3 = vector.load %arg3[%c0_3, %c0_4] : memref<1x512xf32, #tpu.memory_space<vmem>>, vector<1x512xf32>
    %4 = vector.broadcast %3 : vector<1x512xf32> to vector<16x512xf32>
    %5 = arith.addf %2, %4 : vector<16x512xf32>
    %cst_5 = arith.constant 0.000000e+00 : f32
    %6 = vector.broadcast %cst_5 : f32 to vector<16x512xf32>
    %7 = arith.maximumf %5, %6 : vector<16x512xf32>
    %8 = arith.truncf %7 : vector<16x512xf32> to vector<16x512xbf16>
    %c0_6 = arith.constant 0 : index
    %c0_7 = arith.constant 0 : index
    %9 = vector.load %arg4[%c0_6, %c0_7] : memref<512x256xbf16, #tpu.memory_space<vmem>>, vector<512x256xbf16>
    %cst_8 = arith.constant dense<0.000000e+00> : vector<16x256xf32>
    %10 = tpu.matmul %8, %9, %cst_8 {dimension_numbers = #tpu.dot_dimension_numbers<[1], [0], [0], [1], [0, 0, 1, 1], [], []>} : vector<16x512xbf16>, vector<512x256xbf16>, vector<16x256xf32> -> vector<16x256xf32>
    %c0_9 = arith.constant 0 : index
    %c0_10 = arith.constant 0 : index
    %11 = vector.load %arg5[%c0_9, %c0_10] : memref<1x256xf32, #tpu.memory_space<vmem>>, vector<1x256xf32>
    %12 = vector.broadcast %11 : vector<1x256xf32> to vector<16x256xf32>
    %13 = arith.addf %10, %12 : vector<16x256xf32>
    %cst_11 = arith.constant 0.000000e+00 : f32
    %14 = vector.broadcast %cst_11 : f32 to vector<16x256xf32>
    %15 = arith.maximumf %13, %14 : vector<16x256xf32>
    %16 = arith.truncf %15 : vector<16x256xf32> to vector<16x256xbf16>
    %c0_12 = arith.constant 0 : index
    %c0_13 = arith.constant 0 : index
    %17 = vector.load %arg6[%c0_12, %c0_13] : memref<256x128xbf16, #tpu.memory_space<vmem>>, vector<256x128xbf16>
    %cst_14 = arith.constant dense<0.000000e+00> : vector<16x128xf32>
    %18 = tpu.matmul %16, %17, %cst_14 {dimension_numbers = #tpu.dot_dimension_numbers<[1], [0], [0], [1], [0, 0, 1, 1], [], []>} : vector<16x256xbf16>, vector<256x128xbf16>, vector<16x128xf32> -> vector<16x128xf32>
    %c0_15 = arith.constant 0 : index
    %c0_16 = arith.constant 0 : index
    %19 = vector.load %arg7[%c0_15, %c0_16] : memref<1x128xf32, #tpu.memory_space<vmem>>, vector<1x128xf32>
    %20 = vector.broadcast %19 : vector<1x128xf32> to vector<16x128xf32>
    %21 = arith.addf %18, %20 : vector<16x128xf32>
    %cst_17 = arith.constant 0.000000e+00 : f32
    %22 = vector.broadcast %cst_17 : f32 to vector<16x128xf32>
    %23 = arith.maximumf %21, %22 : vector<16x128xf32>
    %24 = arith.truncf %23 : vector<16x128xf32> to vector<16x128xbf16>
    %c0_18 = arith.constant 0 : index
    %c0_19 = arith.constant 0 : index
    %25 = vector.load %arg8[%c0_18, %c0_19] : memref<128x128xbf16, #tpu.memory_space<vmem>>, vector<128x128xbf16>
    %cst_20 = arith.constant dense<0.000000e+00> : vector<16x128xf32>
    %26 = tpu.matmul %24, %25, %cst_20 {dimension_numbers = #tpu.dot_dimension_numbers<[1], [0], [0], [1], [0, 0, 1, 1], [], []>} : vector<16x128xbf16>, vector<128x128xbf16>, vector<16x128xf32> -> vector<16x128xf32>
    %c0_21 = arith.constant 0 : index
    %c0_22 = arith.constant 0 : index
    %27 = vector.load %arg9[%c0_21, %c0_22] : memref<1x128xf32, #tpu.memory_space<vmem>>, vector<1x128xf32>
    %28 = vector.broadcast %27 : vector<1x128xf32> to vector<16x128xf32>
    %29 = arith.addf %26, %28 : vector<16x128xf32>
    %cst_23 = arith.constant 0.000000e+00 : f32
    %30 = vector.broadcast %cst_23 : f32 to vector<16x128xf32>
    %31 = arith.maximumf %29, %30 : vector<16x128xf32>
    %32 = arith.truncf %31 : vector<16x128xf32> to vector<16x128xbf16>
    %c0_24 = arith.constant 0 : index
    %c0_25 = arith.constant 0 : index
    %33 = vector.load %arg10[%c0_24, %c0_25] : memref<128x128xbf16, #tpu.memory_space<vmem>>, vector<128x128xbf16>
    %cst_26 = arith.constant dense<0.000000e+00> : vector<16x128xf32>
    %34 = tpu.matmul %32, %33, %cst_26 {dimension_numbers = #tpu.dot_dimension_numbers<[1], [0], [0], [1], [0, 0, 1, 1], [], []>} : vector<16x128xbf16>, vector<128x128xbf16>, vector<16x128xf32> -> vector<16x128xf32>
    %c0_27 = arith.constant 0 : index
    %c0_28 = arith.constant 0 : index
    %35 = vector.load %arg11[%c0_27, %c0_28] : memref<1x128xf32, #tpu.memory_space<vmem>>, vector<1x128xf32>
    %36 = vector.broadcast %35 : vector<1x128xf32> to vector<16x128xf32>
    %37 = arith.addf %34, %36 : vector<16x128xf32>
    %cst_29 = arith.constant dense<0xFF800000> : vector<16xf32>
    %38 = vector.multi_reduction <maximumf>, %37, %cst_29 [1] : vector<16x128xf32> to vector<16xf32>
    %39 = vector.shape_cast %38 : vector<16xf32> to vector<16x1xf32>
    %40 = vector.broadcast %39 : vector<16x1xf32> to vector<16x128xf32>
    %41 = arith.subf %37, %40 : vector<16x128xf32>
    %42 = math.exp %41 : vector<16x128xf32>
    %cst_30 = arith.constant dense<0.000000e+00> : vector<16xf32>
    %43 = vector.multi_reduction <add>, %42, %cst_30 [1] : vector<16x128xf32> to vector<16xf32>
    %44 = vector.shape_cast %43 : vector<16xf32> to vector<16x1xf32>
    %45 = tpu.reciprocal %44 {approx = true} : vector<16x1xf32> -> vector<16x1xf32>
    %46 = vector.broadcast %45 : vector<16x1xf32> to vector<16x128xf32>
    %47 = arith.mulf %42, %46 : vector<16x128xf32>
    %48 = arith.truncf %47 : vector<16x128xf32> to vector<16x128xbf16>
    %c0_31 = arith.constant 0 : index
    %c0_32 = arith.constant 0 : index
    %49 = vector.load %arg12[%c0_31, %c0_32] : memref<16x128xbf16, #tpu.memory_space<vmem>>, vector<16x128xbf16>
    tpu.vector_store %arg12[%c0_31, %c0_32], %48 {strides = array<i32>} : memref<16x128xbf16, #tpu.memory_space<vmem>>, vector<16x128xbf16>,
    return
  }
  func.func @transform_0(%arg0: i32) -> (i32, i32) {
    %c0_i32 = arith.constant 0 : i32
    %c0_i32_0 = arith.constant 0 : i32
    return %arg0, %c0_i32 : i32, i32
  }
  func.func @transform_1(%arg0: i32) -> (i32, i32) {
    %c0_i32 = arith.constant 0 : i32
    %c0_i32_0 = arith.constant 0 : i32
    %c0_i32_1 = arith.constant 0 : i32
    return %c0_i32, %c0_i32_0 : i32, i32
  }
  func.func @transform_2(%arg0: i32) -> (i32, i32) {
    %c0_i32 = arith.constant 0 : i32
    %c0_i32_0 = arith.constant 0 : i32
    %c0_i32_1 = arith.constant 0 : i32
    return %c0_i32, %c0_i32_0 : i32, i32
  }
  func.func @transform_3(%arg0: i32) -> (i32, i32) {
    %c0_i32 = arith.constant 0 : i32
    %c0_i32_0 = arith.constant 0 : i32
    %c0_i32_1 = arith.constant 0 : i32
    return %c0_i32, %c0_i32_0 : i32, i32
  }
  func.func @transform_4(%arg0: i32) -> (i32, i32) {
    %c0_i32 = arith.constant 0 : i32
    %c0_i32_0 = arith.constant 0 : i32
    %c0_i32_1 = arith.constant 0 : i32
    return %c0_i32, %c0_i32_0 : i32, i32
  }
  func.func @transform_5(%arg0: i32) -> (i32, i32) {
    %c0_i32 = arith.constant 0 : i32
    %c0_i32_0 = arith.constant 0 : i32
    %c0_i32_1 = arith.constant 0 : i32
    return %c0_i32, %c0_i32_0 : i32, i32
  }
  func.func @transform_6(%arg0: i32) -> (i32, i32) {
    %c0_i32 = arith.constant 0 : i32
    %c0_i32_0 = arith.constant 0 : i32
    %c0_i32_1 = arith.constant 0 : i32
    return %c0_i32, %c0_i32_0 : i32, i32
  }
  func.func @transform_7(%arg0: i32) -> (i32, i32) {
    %c0_i32 = arith.constant 0 : i32
    %c0_i32_0 = arith.constant 0 : i32
    %c0_i32_1 = arith.constant 0 : i32
    return %c0_i32, %c0_i32_0 : i32, i32
  }
  func.func @transform_8(%arg0: i32) -> (i32, i32) {
    %c0_i32 = arith.constant 0 : i32
    %c0_i32_0 = arith.constant 0 : i32
    %c0_i32_1 = arith.constant 0 : i32
    return %c0_i32, %c0_i32_0 : i32, i32
  }
  func.func @transform_9(%arg0: i32) -> (i32, i32) {
    %c0_i32 = arith.constant 0 : i32
    %c0_i32_0 = arith.constant 0 : i32
    %c0_i32_1 = arith.constant 0 : i32
    return %c0_i32, %c0_i32_0 : i32, i32
  }
  func.func @transform_10(%arg0: i32) -> (i32, i32) {
    %c0_i32 = arith.constant 0 : i32
    %c0_i32_0 = arith.constant 0 : i32
    %c0_i32_1 = arith.constant 0 : i32
    return %c0_i32, %c0_i32_0 : i32, i32
  }
  func.func @transform_11(%arg0: i32) -> (i32, i32) {
    %c0_i32 = arith.constant 0 : i32
    %c0_i32_0 = arith.constant 0 : i32
    return %arg0, %c0_i32 : i32, i32
  }
}

</mosaic_0001>

<llo_original>
// kernel: tpu_custom_call.1
$region0: #{tpu_custom_call.1}
  #allocation0 [shape = 'u32[]', space=smem, size = 0x4, offset = 0x4, fixed_abs, tag = 'smem constant byte address 0x4 - core index']
  #allocation1 [shape = 'u32[144,128]{1,0:T(1,128)}', space=vmem, size = 0x12000, scoped, tag = 'internal scratch']
  %s0 = inlined_call_operand.hbm [shape: bf16[16,32], index: 0, kind: input, shape index: {}]
  %s1 = inlined_call_operand.hbm [shape: bf16[32,512], index: 1, kind: input, shape index: {}]
  %s2 = inlined_call_operand.vmem [shape: f32[1,512], index: 2, kind: input, shape index: {}]
  %s3 = inlined_call_operand.hbm [shape: bf16[512,256], index: 3, kind: input, shape index: {}]
  %s4 = inlined_call_operand.vmem [shape: f32[1,256], index: 4, kind: input, shape index: {}]
  %s5 = inlined_call_operand.hbm [shape: bf16[256,128], index: 5, kind: input, shape index: {}]
  %s6 = inlined_call_operand.vmem [shape: f32[1,128], index: 6, kind: input, shape index: {}]
  %s7 = inlined_call_operand.hbm [shape: bf16[128,128], index: 7, kind: input, shape index: {}]
  %s8 = inlined_call_operand.vmem [shape: f32[1,128], index: 8, kind: input, shape index: {}]
  %s9 = inlined_call_operand.hbm [shape: bf16[128,128], index: 9, kind: input, shape index: {}]
  %s10 = inlined_call_operand.vmem [shape: f32[1,128], index: 10, kind: input, shape index: {}]
  %s11 = inlined_call_operand.hbm [shape: bf16[16,128], index: 11, kind: output, shape index: {}]
  %s12 = sld [smem:[#allocation0]]
  $region78: #{tpu_custom_call.1} parent=0
    _
  %s14 = ssub.s32 1, %s12
  %s15 = scalar_select 0, %s14, %s12
  $region1: #{tpu_custom_call.1} parent=0
    #allocation2 [shape = 'u8[4096]{0}', space=vmem, size = 0x1000, scoped, tag = 'input window, operand 0, single buffered']
    #allocation3 [shape = 's32[1]{0}', space=sflag, size = 0x4, scoped, tag = 'scoped memory for tpu_custom_call.1']
    #allocation4 [shape = 's32[1]{0}', space=sflag, size = 0x4, scoped, tag = 'scoped memory for tpu_custom_call.1']
    #allocation5 [shape = 'u8[32768]{0}', space=vmem, size = 0x8000, scoped, tag = 'input window, operand 1, single buffered']
    #allocation6 [shape = 's32[1]{0}', space=sflag, size = 0x4, scoped, tag = 'scoped memory for tpu_custom_call.1']
    #allocation7 [shape = 'u8[262144]{0}', space=vmem, size = 0x40000, scoped, tag = 'input window, operand 3, single buffered']
    #allocation8 [shape = 'u8[65536]{0}', space=vmem, size = 0x10000, scoped, tag = 'input window, operand 5, single buffered']
    #allocation9 [shape = 's32[1]{0}', space=sflag, size = 0x4, scoped, tag = 'scoped memory for tpu_custom_call.1']
    #allocation10 [shape = 'u8[32768]{0}', space=vmem, size = 0x8000, scoped, tag = 'input window, operand 7, single buffered']
    #allocation11 [shape = 'u8[32768]{0}', space=vmem, size = 0x8000, scoped, tag = 'input window, operand 9, single buffered']
    #allocation12 [shape = 's32[1]{0}', space=sflag, size = 0x4, scoped, tag = 'scoped memory for tpu_custom_call.1']
    #allocation13 [shape = 'u8[4096]{0}', space=vmem, size = 0x1000, scoped, tag = 'output window, operand 0, single buffered']
    %16 = vsyncpa [#allocation3], 0
    %17 = vsyncpa [#allocation6], 0
    %18 = vsyncpa [#allocation9], 0
    %19 = vsyncpa [#allocation12], 0
    %20 = vsyncpa [#allocation4], 0
    // Predicated region
    $region2: #{tpu_custom_call.1} parent=1 // pred_check
      _
    $region3: #{tpu_custom_call.1} parent=1 // pred_check_branch
      %22 = sbr.rel (0) target = $region5
    $region4: #{tpu_custom_call.1} parent=1 // pred_region
      %s24 = ssub.s32 128, 128
      %25 = vsyncadd [#allocation3], %s24
      %s26 = sshll.u32 [#allocation2], 4
      %s27 = int_to_ptr.vmem [resolvable:$true] %s26
      %32 = dma.hbm_to_vmem [thread:$0]  %s0, 128, %s27, [#allocation3], 64, 64, 4
    $region5: #{tpu_custom_call.1} parent=1 // pred_fallthru
      _
    // Predicated region
    $region6: #{tpu_custom_call.1} parent=1 // pred_check
      _
    $region7: #{tpu_custom_call.1} parent=1 // pred_check_branch
      %34 = sbr.rel (0) target = $region9
    $region8: #{tpu_custom_call.1} parent=1 // pred_region
      %s36 = ssub.s32 1024, 1024
      %37 = vsyncadd [#allocation6], %s36
      %s38 = sshll.u32 [#allocation5], 4
      %s39 = int_to_ptr.vmem [resolvable:$true] %s38
      %44 = dma.hbm_to_vmem [thread:$0]  %s1, 1024, %s39, [#allocation6], 256, 256, 16
    $region9: #{tpu_custom_call.1} parent=1 // pred_fallthru
      _
    // Predicated region
    $region10: #{tpu_custom_call.1} parent=1 // pred_check
      _
    $region11: #{tpu_custom_call.1} parent=1 // pred_check_branch
      %46 = sbr.rel (0) target = $region13
    $region12: #{tpu_custom_call.1} parent=1 // pred_region
      _
    $region13: #{tpu_custom_call.1} parent=1 // pred_fallthru
      _
    // Predicated region
    $region14: #{tpu_custom_call.1} parent=1 // pred_check
      _
    $region15: #{tpu_custom_call.1} parent=1 // pred_check_branch
      %48 = sbr.rel (0) target = $region17
    $region16: #{tpu_custom_call.1} parent=1 // pred_region
      %s50 = ssub.s32 8192, 8192
      %51 = vsyncadd [#allocation6], %s50
      %s52 = sshll.u32 [#allocation7], 4
      %s53 = int_to_ptr.vmem [resolvable:$true] %s52
      %58 = dma.hbm_to_vmem [thread:$0]  %s3, 8192, %s53, [#allocation6], 128, 128, 8
    $region17: #{tpu_custom_call.1} parent=1 // pred_fallthru
      _
    // Predicated region
    $region18: #{tpu_custom_call.1} parent=1 // pred_check
      _
    $region19: #{tpu_custom_call.1} parent=1 // pred_check_branch
      %60 = sbr.rel (0) target = $region21
    $region20: #{tpu_custom_call.1} parent=1 // pred_region
      _
    $region21: #{tpu_custom_call.1} parent=1 // pred_fallthru
      _
    // Predicated region
    $region22: #{tpu_custom_call.1} parent=1 // pred_check
      _
    $region23: #{tpu_custom_call.1} parent=1 // pred_check_branch
      %62 = sbr.rel (0) target = $region25
    $region24: #{tpu_custom_call.1} parent=1 // pred_region
      %s64 = ssub.s32 2048, 2048
      %65 = vsyncadd [#allocation9], %s64
      %s66 = sshll.u32 [#allocation8], 4
      %s67 = int_to_ptr.vmem [resolvable:$true] %s66
      %72 = dma.hbm_to_vmem [thread:$0]  %s5, 2048, %s67, [#allocation9], 64, 64, 4
    $region25: #{tpu_custom_call.1} parent=1 // pred_fallthru
      _
    // Predicated region
    $region26: #{tpu_custom_call.1} parent=1 // pred_check
      _
    $region27: #{tpu_custom_call.1} parent=1 // pred_check_branch
      %74 = sbr.rel (0) target = $region29
    $region28: #{tpu_custom_call.1} parent=1 // pred_region
      _
    $region29: #{tpu_custom_call.1} parent=1 // pred_fallthru
      _
    // Predicated region
    $region30: #{tpu_custom_call.1} parent=1 // pred_check
      _
    $region31: #{tpu_custom_call.1} parent=1 // pred_check_branch
      %76 = sbr.rel (0) target = $region33
    $region32: #{tpu_custom_call.1} parent=1 // pred_region
      %s78 = ssub.s32 1024, 1024
      %79 = vsyncadd [#allocation9], %s78
      %s80 = sshll.u32 [#allocation10], 4
      %s81 = int_to_ptr.vmem [resolvable:$true] %s80
      %86 = dma.hbm_to_vmem [thread:$0]  %s7, 1024, %s81, [#allocation9], 64, 64, 4
    $region33: #{tpu_custom_call.1} parent=1 // pred_fallthru
      _
    // Predicated region
    $region34: #{tpu_custom_call.1} parent=1 // pred_check
      _
    $region35: #{tpu_custom_call.1} parent=1 // pred_check_branch
      %88 = sbr.rel (0) target = $region37
    $region36: #{tpu_custom_call.1} parent=1 // pred_region
      _
    $region37: #{tpu_custom_call.1} parent=1 // pred_fallthru
      _
    // Predicated region
    $region38: #{tpu_custom_call.1} parent=1 // pred_check
      _
    $region39: #{tpu_custom_call.1} parent=1 // pred_check_branch
      %90 = sbr.rel (0) target = $region41
    $region40: #{tpu_custom_call.1} parent=1 // pred_region
      %s92 = ssub.s32 1024, 1024
      %93 = vsyncadd [#allocation12], %s92
      %s94 = sshll.u32 [#allocation11], 4
      %s95 = int_to_ptr.vmem [resolvable:$true] %s94
      %100 = dma.hbm_to_vmem [thread:$0]  %s9, 1024, %s95, [#allocation12], 64, 64, 4
    $region41: #{tpu_custom_call.1} parent=1 // pred_fallthru
      _
    // Predicated region
    $region42: #{tpu_custom_call.1} parent=1 // pred_check
      _
    $region43: #{tpu_custom_call.1} parent=1 // pred_check_branch
      %102 = sbr.rel (0) target = $region45
    $region44: #{tpu_custom_call.1} parent=1 // pred_region
      _
    $region45: #{tpu_custom_call.1} parent=1 // pred_fallthru
      _
    // Predicated region
    $region46: #{tpu_custom_call.1} parent=1 // pred_check
      _
    $region47: #{tpu_custom_call.1} parent=1 // pred_check_branch
      %104 = sbr.rel (0) target = $region49
    $region48: #{tpu_custom_call.1} parent=1 // pred_region
      %105 = dma.done [#allocation3], 128
    $region49: #{tpu_custom_call.1} parent=1 // pred_fallthru
      _
    // Predicated region
    $region50: #{tpu_custom_call.1} parent=1 // pred_check
      _
    $region51: #{tpu_custom_call.1} parent=1 // pred_check_branch
      %107 = sbr.rel (0) target = $region53
    $region52: #{tpu_custom_call.1} parent=1 // pred_region
      %108 = dma.done [#allocation6], 1024
    $region53: #{tpu_custom_call.1} parent=1 // pred_fallthru
      _
    // Predicated region
    $region54: #{tpu_custom_call.1} parent=1 // pred_check
      _
    $region55: #{tpu_custom_call.1} parent=1 // pred_check_branch
      %110 = sbr.rel (0) target = $region57
    $region56: #{tpu_custom_call.1} parent=1 // pred_region
      %111 = dma.done [#allocation6], 8192
    $region57: #{tpu_custom_call.1} parent=1 // pred_fallthru
      _
    // Predicated region
    $region58: #{tpu_custom_call.1} parent=1 // pred_check
      _
    $region59: #{tpu_custom_call.1} parent=1 // pred_check_branch
      %113 = sbr.rel (0) target = $region61
    $region60: #{tpu_custom_call.1} parent=1 // pred_region
      %114 = dma.done [#allocation9], 2048
    $region61: #{tpu_custom_call.1} parent=1 // pred_fallthru
      _
    // Predicated region
    $region62: #{tpu_custom_call.1} parent=1 // pred_check
      _
    $region63: #{tpu_custom_call.1} parent=1 // pred_check_branch
      %116 = sbr.rel (0) target = $region65
    $region64: #{tpu_custom_call.1} parent=1 // pred_region
      %117 = dma.done [#allocation9], 1024
    $region65: #{tpu_custom_call.1} parent=1 // pred_fallthru
      _
    // Predicated region
    $region66: #{tpu_custom_call.1} parent=1 // pred_check
      _
    $region67: #{tpu_custom_call.1} parent=1 // pred_check_branch
      %119 = sbr.rel (0) target = $region69
    $region68: #{tpu_custom_call.1} parent=1 // pred_region
      %120 = dma.done [#allocation12], 1024
    $region69: #{tpu_custom_call.1} parent=1 // pred_fallthru
      _
    %v122 = vld [vmem:[#allocation2] sm:$0xf]
    %v123 = vld [vmem:[#allocation2 + $0x4] sm:$0xf]
    %v124 = vld [vmem:[#allocation5] sm:$0xff]
    %v125 = vld [vmem:[#allocation5 + $0x8] sm:$0xff]
    %v126 = vld [vmem:[#allocation5 + $0x10] sm:$0xff]
    %v127 = vld [vmem:[#allocation5 + $0x18] sm:$0xff]
    %v128 = vld [vmem:[#allocation5 + $0x20] sm:$0xff]
    %v129 = vld [vmem:[#allocation5 + $0x28] sm:$0xff]
    %v130 = vld [vmem:[#allocation5 + $0x30] sm:$0xff]
    %v131 = vld [vmem:[#allocation5 + $0x38] sm:$0xff]
    %v132 = vld [vmem:[%s2] sm:$0xf]
    %v134 = vlaneseq
    %v135 = vshrl.u32 %v134, 7
    %v136 = vsub.s32 0, %v135
    %v137 = vrot.slane %v132, %v136
    %v138 = vlaneseq
    %v139 = vshrl.u32 %v138, 7
    %v140 = vsub.s32 1, %v139
    %v141 = vrot.slane %v132, %v140
    %v142 = vlaneseq
    %v143 = vshrl.u32 %v142, 7
    %v144 = vsub.s32 2, %v143
    %v145 = vrot.slane %v132, %v144
    %v146 = vlaneseq
    %v147 = vshrl.u32 %v146, 7
    %v148 = vsub.s32 3, %v147
    %v149 = vrot.slane %v132, %v148
    %v156 = vunpack.c.l.b16 %v122
    %v157 = vunpack.c.l.b16 %v123
    %v158 = vpack.c.b16 %v157, %v156
    %v167 = vunpack.c.l.b16 %v124
    %v168 = vunpack.c.h.b16 %v124
    %v169 = vunpack.c.l.b16 %v125
    %v170 = vunpack.c.h.b16 %v125
    %v171 = vunpack.c.l.b16 %v126
    %v172 = vunpack.c.h.b16 %v126
    %v173 = vunpack.c.l.b16 %v127
    %v174 = vunpack.c.h.b16 %v127
    %v175 = vunpack.c.l.b16 %v128
    %v176 = vunpack.c.h.b16 %v128
    %v177 = vunpack.c.l.b16 %v129
    %v178 = vunpack.c.h.b16 %v129
    %v179 = vunpack.c.l.b16 %v130
    %v180 = vunpack.c.h.b16 %v130
    %v181 = vunpack.c.l.b16 %v131
    %v182 = vunpack.c.h.b16 %v131
    %v183 = vpack.c.b16 %v171, %v167
    %v184 = vpack.c.b16 %v172, %v168
    %v185 = vpack.c.b16 %v173, %v169
    %v186 = vpack.c.b16 %v174, %v170
    %v187 = vpack.c.b16 %v179, %v175
    %v188 = vpack.c.b16 %v180, %v176
    %v189 = vpack.c.b16 %v181, %v177
    %v190 = vpack.c.b16 %v182, %v178
    %vm199 = vcmask 261120
    %v201 = vsel %vm199, %v158, 0
    %203 = vmatprep.subr.bf16.mxu0 %v184
    %204 = vmatpush1.bf16.msra.mxu0 %v183
    %205 = vmatprep.subr.bf16.mxu0 %v188
    %206 = vmatpush1.bf16.msra.mxu0 %v187
    %207 = vmatprep.subr.bf16.mxu0 0
    %208 = vmatpush1.bf16.msra.mxu0 0
    %209 = vmatprep.subr.bf16.mxu0 0
    %210 = vmatpush1.bf16.msra.mxu0 0
    %211 = vmatprep.subr.bf16.mxu0 0
    %212 = vmatpush1.bf16.msra.mxu0 0
    %213 = vmatprep.subr.bf16.mxu0 0
    %214 = vmatpush1.bf16.msra.mxu0 0
    %215 = vmatprep.subr.bf16.mxu0 0
    %216 = vmatpush1.bf16.msra.mxu0 0
    %217 = vmatprep.subr.bf16.mxu0 0
    %218 = vmatpush1.bf16.msra.mxu0 0
    %219 = vmatprep.subr.bf16.mxu0 0
    %220 = vmatpush1.bf16.msra.mxu0 0
    %221 = vmatprep.subr.bf16.mxu0 0
    %222 = vmatpush1.bf16.msra.mxu0 0
    %223 = vmatprep.subr.bf16.mxu0 0
    %224 = vmatpush1.bf16.msra.mxu0 0
    %225 = vmatprep.subr.bf16.mxu0 0
    %226 = vmatpush1.bf16.msra.mxu0 0
    %227 = vmatprep.subr.bf16.mxu0 0
    %228 = vmatpush1.bf16.msra.mxu0 0
    %229 = vmatprep.subr.bf16.mxu0 0
    %230 = vmatpush1.bf16.msra.mxu0 0
    %231 = vmatprep.subr.bf16.mxu0 0
    %232 = vmatpush1.bf16.msra.mxu0 0
    %233 = vmatprep.subr.bf16.mxu0 0
    %234 = vmatpush1.bf16.msra.mxu0 0
    %235 = vmatprep.mubr.bf16.mxu0 0
    %236 = vmatmul.mubr.bf16.gmra.mrb[0].mxu0 %v201
    %v237 = vpop.f32.mrb[0].mxu0
    %v238 = vadd.f32 %v137, %v237
    %v239 = vpop.f32.mrb[0].mxu0
    %v240 = vadd.f32 %v141, %v239
    %v241 = vpop.f32.mrb[0].mxu0
    %v242 = vadd.f32 %v137, %v241
    %v243 = vpop.f32.mrb[0].mxu0
    %v244 = vadd.f32 %v141, %v243
    %245 = vdwg.mxu0
    %246 = vmatprep.subr.bf16.mxu0 %v186
    %247 = vmatpush1.bf16.msra.mxu0 %v185
    %248 = vmatprep.subr.bf16.mxu0 %v190
    %249 = vmatpush1.bf16.msra.mxu0 %v189
    %250 = vmatprep.subr.bf16.mxu0 0
    %251 = vmatpush1.bf16.msra.mxu0 0
    %252 = vmatprep.subr.bf16.mxu0 0
    %253 = vmatpush1.bf16.msra.mxu0 0
    %254 = vmatprep.subr.bf16.mxu0 0
    %255 = vmatpush1.bf16.msra.mxu0 0
    %256 = vmatprep.subr.bf16.mxu0 0
    %257 = vmatpush1.bf16.msra.mxu0 0
    %258 = vmatprep.subr.bf16.mxu0 0
    %259 = vmatpush1.bf16.msra.mxu0 0
    %260 = vmatprep.subr.bf16.mxu0 0
    %261 = vmatpush1.bf16.msra.mxu0 0
    %262 = vmatprep.subr.bf16.mxu0 0
    %263 = vmatpush1.bf16.msra.mxu0 0
    %264 = vmatprep.subr.bf16.mxu0 0
    %265 = vmatpush1.bf16.msra.mxu0 0
    %266 = vmatprep.subr.bf16.mxu0 0
    %267 = vmatpush1.bf16.msra.mxu0 0
    %268 = vmatprep.subr.bf16.mxu0 0
    %269 = vmatpush1.bf16.msra.mxu0 0
    %270 = vmatprep.subr.bf16.mxu0 0
    %271 = vmatpush1.bf16.msra.mxu0 0
    %272 = vmatprep.subr.bf16.mxu0 0
    %273 = vmatpush1.bf16.msra.mxu0 0
    %274 = vmatprep.subr.bf16.mxu0 0
    %275 = vmatpush1.bf16.msra.mxu0 0
    %276 = vmatprep.subr.bf16.mxu0 0
    %277 = vmatpush1.bf16.msra.mxu0 0
    %278 = vmatprep.mubr.bf16.mxu0 0
    %279 = vmatmul.mubr.bf16.gmra.mrb[0].mxu0 %v201
    %v280 = vpop.f32.mrb[0].mxu0
    %v281 = vadd.f32 %v145, %v280
    %v282 = vpop.f32.mrb[0].mxu0
    %v283 = vadd.f32 %v149, %v282
    %v284 = vpop.f32.mrb[0].mxu0
    %v285 = vadd.f32 %v145, %v284
    %v286 = vpop.f32.mrb[0].mxu0
    %v287 = vadd.f32 %v149, %v286
    %288 = vdwg.mxu0
    %v289 = vmax.f32 %v238, 0.0
    %v290 = vmax.f32 %v240, 0.0
    %v291 = vmax.f32 %v281, 0.0
    %v292 = vmax.f32 %v283, 0.0
    %v293 = vmax.f32 %v242, 0.0
    %v294 = vmax.f32 %v244, 0.0
    %v295 = vmax.f32 %v285, 0.0
    %v296 = vmax.f32 %v287, 0.0
    %v297 = vpack.c.bf16 %v293, %v289
    %v298 = vpack.c.bf16 %v294, %v290
    %v299 = vpack.c.bf16 %v295, %v291
    %v300 = vpack.c.bf16 %v296, %v292
    %v301 = vld [vmem:[#allocation7] sm:$0xff]
    %v302 = vld [vmem:[#allocation7 + $0x8] sm:$0xff]
    %v303 = vld [vmem:[#allocation7 + $0x10] sm:$0xff]
    %v304 = vld [vmem:[#allocation7 + $0x18] sm:$0xff]
    %v305 = vld [vmem:[#allocation7 + $0x20] sm:$0xff]
    %v306 = vld [vmem:[#allocation7 + $0x28] sm:$0xff]
    %v307 = vld [vmem:[#allocation7 + $0x30] sm:$0xff]
    %v308 = vld [vmem:[#allocation7 + $0x38] sm:$0xff]
    %v309 = vld [vmem:[#allocation7 + $0x40] sm:$0xff]
    %v310 = vld [vmem:[#allocation7 + $0x48] sm:$0xff]
    %v311 = vld [vmem:[#allocation7 + $0x50] sm:$0xff]
    %v312 = vld [vmem:[#allocation7 + $0x58] sm:$0xff]
    %v313 = vld [vmem:[#allocation7 + $0x60] sm:$0xff]
    %v314 = vld [vmem:[#allocation7 + $0x68] sm:$0xff]
    %v315 = vld [vmem:[#allocation7 + $0x70] sm:$0xff]
    %v316 = vld [vmem:[#allocation7 + $0x78] sm:$0xff]
    %v317 = vld [vmem:[#allocation7 + $0x80] sm:$0xff]
    %v318 = vld [vmem:[#allocation7 + $0x88] sm:$0xff]
    %v319 = vld [vmem:[#allocation7 + $0x90] sm:$0xff]
    %v320 = vld [vmem:[#allocation7 + $0x98] sm:$0xff]
    %v321 = vld [vmem:[#allocation7 + $0xa0] sm:$0xff]
    %v322 = vld [vmem:[#allocation7 + $0xa8] sm:$0xff]
    %v323 = vld [vmem:[#allocation7 + $0xb0] sm:$0xff]
    %v324 = vld [vmem:[#allocation7 + $0xb8] sm:$0xff]
    %v325 = vld [vmem:[#allocation7 + $0xc0] sm:$0xff]
    %v326 = vld [vmem:[#allocation7 + $0xc8] sm:$0xff]
    %v327 = vld [vmem:[#allocation7 + $0xd0] sm:$0xff]
    %v328 = vld [vmem:[#allocation7 + $0xd8] sm:$0xff]
    %v329 = vld [vmem:[#allocation7 + $0xe0] sm:$0xff]
    %v330 = vld [vmem:[#allocation7 + $0xe8] sm:$0xff]
    %v331 = vld [vmem:[#allocation7 + $0xf0] sm:$0xff]
    %v332 = vld [vmem:[#allocation7 + $0xf8] sm:$0xff]
    %v333 = vld [vmem:[#allocation7 + $0x100] sm:$0xff]
    %v334 = vld [vmem:[#allocation7 + $0x108] sm:$0xff]
    %v335 = vld [vmem:[#allocation7 + $0x110] sm:$0xff]
    %v336 = vld [vmem:[#allocation7 + $0x118] sm:$0xff]
    %v337 = vld [vmem:[#allocation7 + $0x120] sm:$0xff]
    %v338 = vld [vmem:[#allocation7 + $0x128] sm:$0xff]
    %v339 = vld [vmem:[#allocation7 + $0x130] sm:$0xff]
    %v340 = vld [vmem:[#allocation7 + $0x138] sm:$0xff]
    %v341 = vld [vmem:[#allocation7 + $0x140] sm:$0xff]
    %v342 = vld [vmem:[#allocation7 + $0x148] sm:$0xff]
    %v343 = vld [vmem:[#allocation7 + $0x150] sm:$0xff]
    %v344 = vld [vmem:[#allocation7 + $0x158] sm:$0xff]
    %v345 = vld [vmem:[#allocation7 + $0x160] sm:$0xff]
    %v346 = vld [vmem:[#allocation7 + $0x168] sm:$0xff]
    %v347 = vld [vmem:[#allocation7 + $0x170] sm:$0xff]
    %v348 = vld [vmem:[#allocation7 + $0x178] sm:$0xff]
    %v349 = vld [vmem:[#allocation7 + $0x180] sm:$0xff]
    %v350 = vld [vmem:[#allocation7 + $0x188] sm:$0xff]
    %v351 = vld [vmem:[#allocation7 + $0x190] sm:$0xff]
    %v352 = vld [vmem:[#allocation7 + $0x198] sm:$0xff]
    %v353 = vld [vmem:[#allocation7 + $0x1a0] sm:$0xff]
    %v354 = vld [vmem:[#allocation7 + $0x1a8] sm:$0xff]
    %v355 = vld [vmem:[#allocation7 + $0x1b0] sm:$0xff]
    %v356 = vld [vmem:[#allocation7 + $0x1b8] sm:$0xff]
    %v357 = vld [vmem:[#allocation7 + $0x1c0] sm:$0xff]
    %v358 = vld [vmem:[#allocation7 + $0x1c8] sm:$0xff]
    %v359 = vld [vmem:[#allocation7 + $0x1d0] sm:$0xff]
    %v360 = vld [vmem:[#allocation7 + $0x1d8] sm:$0xff]
    %v361 = vld [vmem:[#allocation7 + $0x1e0] sm:$0xff]
    %v362 = vld [vmem:[#allocation7 + $0x1e8] sm:$0xff]
    %v363 = vld [vmem:[#allocation7 + $0x1f0] sm:$0xff]
    %v364 = vld [vmem:[#allocation7 + $0x1f8] sm:$0xff]
    %v365 = vld [vmem:[%s4] sm:$0x3]
    %v367 = vlaneseq
    %v368 = vshrl.u32 %v367, 7
    %v369 = vsub.s32 0, %v368
    %v370 = vrot.slane %v365, %v369
    %v371 = vlaneseq
    %v372 = vshrl.u32 %v371, 7
    %v373 = vsub.s32 1, %v372
    %v374 = vrot.slane %v365, %v373
    %v441 = vunpack.c.l.b16 %v301
    %v442 = vunpack.c.h.b16 %v301
    %v443 = vunpack.c.l.b16 %v302
    %v444 = vunpack.c.h.b16 %v302
    %v445 = vunpack.c.l.b16 %v303
    %v446 = vunpack.c.h.b16 %v303
    %v447 = vunpack.c.l.b16 %v304
    %v448 = vunpack.c.h.b16 %v304
    %v449 = vunpack.c.l.b16 %v305
    %v450 = vunpack.c.h.b16 %v305
    %v451 = vunpack.c.l.b16 %v306
    %v452 = vunpack.c.h.b16 %v306
    %v453 = vunpack.c.l.b16 %v307
    %v454 = vunpack.c.h.b16 %v307
    %v455 = vunpack.c.l.b16 %v308
    %v456 = vunpack.c.h.b16 %v308
    %v457 = vunpack.c.l.b16 %v309
    %v458 = vunpack.c.h.b16 %v309
    %v459 = vunpack.c.l.b16 %v310
    %v460 = vunpack.c.h.b16 %v310
    %v461 = vunpack.c.l.b16 %v311
    %v462 = vunpack.c.h.b16 %v311
    %v463 = vunpack.c.l.b16 %v312
    %v464 = vunpack.c.h.b16 %v312
    %v465 = vunpack.c.l.b16 %v313
    %v466 = vunpack.c.h.b16 %v313
    %v467 = vunpack.c.l.b16 %v314
    %v468 = vunpack.c.h.b16 %v314
    %v469 = vunpack.c.l.b16 %v315
    %v470 = vunpack.c.h.b16 %v315
    %v471 = vunpack.c.l.b16 %v316
    %v472 = vunpack.c.h.b16 %v316
    %v473 = vunpack.c.l.b16 %v317
    %v474 = vunpack.c.h.b16 %v317
    %v475 = vunpack.c.l.b16 %v318
    %v476 = vunpack.c.h.b16 %v318
    %v477 = vunpack.c.l.b16 %v319
    %v478 = vunpack.c.h.b16 %v319
    %v479 = vunpack.c.l.b16 %v320
    %v480 = vunpack.c.h.b16 %v320
    %v481 = vunpack.c.l.b16 %v321
    %v482 = vunpack.c.h.b16 %v321
    %v483 = vunpack.c.l.b16 %v322
    %v484 = vunpack.c.h.b16 %v322
    %v485 = vunpack.c.l.b16 %v323
    %v486 = vunpack.c.h.b16 %v323
    %v487 = vunpack.c.l.b16 %v324
    %v488 = vunpack.c.h.b16 %v324
    %v489 = vunpack.c.l.b16 %v325
    %v490 = vunpack.c.h.b16 %v325
    %v491 = vunpack.c.l.b16 %v326
    %v492 = vunpack.c.h.b16 %v326
    %v493 = vunpack.c.l.b16 %v327
    %v494 = vunpack.c.h.b16 %v327
    %v495 = vunpack.c.l.b16 %v328
    %v496 = vunpack.c.h.b16 %v328
    %v497 = vunpack.c.l.b16 %v329
    %v498 = vunpack.c.h.b16 %v329
    %v499 = vunpack.c.l.b16 %v330
    %v500 = vunpack.c.h.b16 %v330
    %v501 = vunpack.c.l.b16 %v331
    %v502 = vunpack.c.h.b16 %v331
    %v503 = vunpack.c.l.b16 %v332
    %v504 = vunpack.c.h.b16 %v332
    %v505 = vunpack.c.l.b16 %v333
    %v506 = vunpack.c.h.b16 %v333
    %v507 = vunpack.c.l.b16 %v334
    %v508 = vunpack.c.h.b16 %v334
    %v509 = vunpack.c.l.b16 %v335
    %v510 = vunpack.c.h.b16 %v335
    %v511 = vunpack.c.l.b16 %v336
    %v512 = vunpack.c.h.b16 %v336
    %v513 = vunpack.c.l.b16 %v337
    %v514 = vunpack.c.h.b16 %v337
    %v515 = vunpack.c.l.b16 %v338
    %v516 = vunpack.c.h.b16 %v338
    %v517 = vunpack.c.l.b16 %v339
    %v518 = vunpack.c.h.b16 %v339
    %v519 = vunpack.c.l.b16 %v340
    %v520 = vunpack.c.h.b16 %v340
    %v521 = vunpack.c.l.b16 %v341
    %v522 = vunpack.c.h.b16 %v341
    %v523 = vunpack.c.l.b16 %v342
    %v524 = vunpack.c.h.b16 %v342
    %v525 = vunpack.c.l.b16 %v343
    %v526 = vunpack.c.h.b16 %v343
    %v527 = vunpack.c.l.b16 %v344
    %v528 = vunpack.c.h.b16 %v344
    %v529 = vunpack.c.l.b16 %v345
    %v530 = vunpack.c.h.b16 %v345
    %v531 = vunpack.c.l.b16 %v346
    %v532 = vunpack.c.h.b16 %v346
    %v533 = vunpack.c.l.b16 %v347
    %v534 = vunpack.c.h.b16 %v347
    %v535 = vunpack.c.l.b16 %v348
    %v536 = vunpack.c.h.b16 %v348
    %v537 = vunpack.c.l.b16 %v349
    %v538 = vunpack.c.h.b16 %v349
    %v539 = vunpack.c.l.b16 %v350
    %v540 = vunpack.c.h.b16 %v350
    %v541 = vunpack.c.l.b16 %v351
    %v542 = vunpack.c.h.b16 %v351
    %v543 = vunpack.c.l.b16 %v352
    %v544 = vunpack.c.h.b16 %v352
    %v545 = vunpack.c.l.b16 %v353
    %v546 = vunpack.c.h.b16 %v353
    %v547 = vunpack.c.l.b16 %v354
    %v548 = vunpack.c.h.b16 %v354
    %v549 = vunpack.c.l.b16 %v355
    %v550 = vunpack.c.h.b16 %v355
    %v551 = vunpack.c.l.b16 %v356
    %v552 = vunpack.c.h.b16 %v356
    %v553 = vunpack.c.l.b16 %v357
    %v554 = vunpack.c.h.b16 %v357
    %v555 = vunpack.c.l.b16 %v358
    %v556 = vunpack.c.h.b16 %v358
    %v557 = vunpack.c.l.b16 %v359
    %v558 = vunpack.c.h.b16 %v359
    %v559 = vunpack.c.l.b16 %v360
    %v560 = vunpack.c.h.b16 %v360
    %v561 = vunpack.c.l.b16 %v361
    %v562 = vunpack.c.h.b16 %v361
    %v563 = vunpack.c.l.b16 %v362
    %v564 = vunpack.c.h.b16 %v362
    %v565 = vunpack.c.l.b16 %v363
    %v566 = vunpack.c.h.b16 %v363
    %v567 = vunpack.c.l.b16 %v364
    %v568 = vunpack.c.h.b16 %v364
    %v569 = vpack.c.b16 %v443, %v441
    %v570 = vpack.c.b16 %v444, %v442
    %v571 = vpack.c.b16 %v447, %v445
    %v572 = vpack.c.b16 %v448, %v446
    %v573 = vpack.c.b16 %v451, %v449
    %v574 = vpack.c.b16 %v452, %v450
    %v575 = vpack.c.b16 %v455, %v453
    %v576 = vpack.c.b16 %v456, %v454
    %v577 = vpack.c.b16 %v459, %v457
    %v578 = vpack.c.b16 %v460, %v458
    %v579 = vpack.c.b16 %v463, %v461
    %v580 = vpack.c.b16 %v464, %v462
    %v581 = vpack.c.b16 %v467, %v465
    %v582 = vpack.c.b16 %v468, %v466
    %v583 = vpack.c.b16 %v471, %v469
    %v584 = vpack.c.b16 %v472, %v470
    %v585 = vpack.c.b16 %v475, %v473
    %v586 = vpack.c.b16 %v476, %v474
    %v587 = vpack.c.b16 %v479, %v477
    %v588 = vpack.c.b16 %v480, %v478
    %v589 = vpack.c.b16 %v483, %v481
    %v590 = vpack.c.b16 %v484, %v482
    %v591 = vpack.c.b16 %v487, %v485
    %v592 = vpack.c.b16 %v488, %v486
    %v593 = vpack.c.b16 %v491, %v489
    %v594 = vpack.c.b16 %v492, %v490
    %v595 = vpack.c.b16 %v495, %v493
    %v596 = vpack.c.b16 %v496, %v494
    %v597 = vpack.c.b16 %v499, %v497
    %v598 = vpack.c.b16 %v500, %v498
    %v599 = vpack.c.b16 %v503, %v501
    %v600 = vpack.c.b16 %v504, %v502
    %v601 = vpack.c.b16 %v507, %v505
    %v602 = vpack.c.b16 %v508, %v506
    %v603 = vpack.c.b16 %v511, %v509
    %v604 = vpack.c.b16 %v512, %v510
    %v605 = vpack.c.b16 %v515, %v513
    %v606 = vpack.c.b16 %v516, %v514
    %v607 = vpack.c.b16 %v519, %v517
    %v608 = vpack.c.b16 %v520, %v518
    %v609 = vpack.c.b16 %v523, %v521
    %v610 = vpack.c.b16 %v524, %v522
    %v611 = vpack.c.b16 %v527, %v525
    %v612 = vpack.c.b16 %v528, %v526
    %v613 = vpack.c.b16 %v531, %v529
    %v614 = vpack.c.b16 %v532, %v530
    %v615 = vpack.c.b16 %v535, %v533
    %v616 = vpack.c.b16 %v536, %v534
    %v617 = vpack.c.b16 %v539, %v537
    %v618 = vpack.c.b16 %v540, %v538
    %v619 = vpack.c.b16 %v543, %v541
    %v620 = vpack.c.b16 %v544, %v542
    %v621 = vpack.c.b16 %v547, %v545
    %v622 = vpack.c.b16 %v548, %v546
    %v623 = vpack.c.b16 %v551, %v549
    %v624 = vpack.c.b16 %v552, %v550
    %v625 = vpack.c.b16 %v555, %v553
    %v626 = vpack.c.b16 %v556, %v554
    %v627 = vpack.c.b16 %v559, %v557
    %v628 = vpack.c.b16 %v560, %v558
    %v629 = vpack.c.b16 %v563, %v561
    %v630 = vpack.c.b16 %v564, %v562
    %v631 = vpack.c.b16 %v567, %v565
    %v632 = vpack.c.b16 %v568, %v566
    %697 = vmatprep.subr.bf16.mxu0 %v570
    %698 = vmatpush1.bf16.msra.mxu0 %v569
    %699 = vmatprep.subr.bf16.mxu0 %v572
    %700 = vmatpush1.bf16.msra.mxu0 %v571
    %701 = vmatprep.subr.bf16.mxu0 %v574
    %702 = vmatpush1.bf16.msra.mxu0 %v573
    %703 = vmatprep.subr.bf16.mxu0 %v576
    %704 = vmatpush1.bf16.msra.mxu0 %v575
    %705 = vmatprep.subr.bf16.mxu0 %v578
    %706 = vmatpush1.bf16.msra.mxu0 %v577
    %707 = vmatprep.subr.bf16.mxu0 %v580
    %708 = vmatpush1.bf16.msra.mxu0 %v579
    %709 = vmatprep.subr.bf16.mxu0 %v582
    %710 = vmatpush1.bf16.msra.mxu0 %v581
    %711 = vmatprep.subr.bf16.mxu0 %v584
    %712 = vmatpush1.bf16.msra.mxu0 %v583
    %713 = vmatprep.subr.bf16.mxu0 %v586
    %714 = vmatpush1.bf16.msra.mxu0 %v585
    %715 = vmatprep.subr.bf16.mxu0 %v588
    %716 = vmatpush1.bf16.msra.mxu0 %v587
    %717 = vmatprep.subr.bf16.mxu0 %v590
    %718 = vmatpush1.bf16.msra.mxu0 %v589
    %719 = vmatprep.subr.bf16.mxu0 %v592
    %720 = vmatpush1.bf16.msra.mxu0 %v591
    %721 = vmatprep.subr.bf16.mxu0 %v594
    %722 = vmatpush1.bf16.msra.mxu0 %v593
    %723 = vmatprep.subr.bf16.mxu0 %v596
    %724 = vmatpush1.bf16.msra.mxu0 %v595
    %725 = vmatprep.subr.bf16.mxu0 %v598
    %726 = vmatpush1.bf16.msra.mxu0 %v597
    %727 = vmatprep.subr.bf16.mxu0 %v600
    %728 = vmatpush1.bf16.msra.mxu0 %v599
    %729 = vmatprep.mubr.bf16.mxu0 %v298
    %730 = vmatmul.mubr.bf16.gmra.mrb[0].mxu0 %v297
    %v731 = vpop.f32.mrb[0].mxu0
    %v732 = vadd.f32 %v370, %v731
    %v733 = vpop.f32.mrb[0].mxu0
    %v734 = vadd.f32 %v374, %v733
    %v735 = vpop.f32.mrb[0].mxu0
    %v736 = vadd.f32 %v370, %v735
    %v737 = vpop.f32.mrb[0].mxu0
    %v738 = vadd.f32 %v374, %v737
    %739 = vdwg.mxu0
    %740 = vmatprep.subr.bf16.mxu0 %v602
    %741 = vmatpush1.bf16.msra.mxu0 %v601
    %742 = vmatprep.subr.bf16.mxu0 %v604
    %743 = vmatpush1.bf16.msra.mxu0 %v603
    %744 = vmatprep.subr.bf16.mxu0 %v606
    %745 = vmatpush1.bf16.msra.mxu0 %v605
    %746 = vmatprep.subr.bf16.mxu0 %v608
    %747 = vmatpush1.bf16.msra.mxu0 %v607
    %748 = vmatprep.subr.bf16.mxu0 %v610
    %749 = vmatpush1.bf16.msra.mxu0 %v609
    %750 = vmatprep.subr.bf16.mxu0 %v612
    %751 = vmatpush1.bf16.msra.mxu0 %v611
    %752 = vmatprep.subr.bf16.mxu0 %v614
    %753 = vmatpush1.bf16.msra.mxu0 %v613
    %754 = vmatprep.subr.bf16.mxu0 %v616
    %755 = vmatpush1.bf16.msra.mxu0 %v615
    %756 = vmatprep.subr.bf16.mxu0 %v618
    %757 = vmatpush1.bf16.msra.mxu0 %v617
    %758 = vmatprep.subr.bf16.mxu0 %v620
    %759 = vmatpush1.bf16.msra.mxu0 %v619
    %760 = vmatprep.subr.bf16.mxu0 %v622
    %761 = vmatpush1.bf16.msra.mxu0 %v621
    %762 = vmatprep.subr.bf16.mxu0 %v624
    %763 = vmatpush1.bf16.msra.mxu0 %v623
    %764 = vmatprep.subr.bf16.mxu0 %v626
    %765 = vmatpush1.bf16.msra.mxu0 %v625
    %766 = vmatprep.subr.bf16.mxu0 %v628
    %767 = vmatpush1.bf16.msra.mxu0 %v627
    %768 = vmatprep.subr.bf16.mxu0 %v630
    %769 = vmatpush1.bf16.msra.mxu0 %v629
    %770 = vmatprep.subr.bf16.mxu0 %v632
    %771 = vmatpush1.bf16.msra.mxu0 %v631
    %772 = vmatprep.mubr.bf16.mxu0 %v300
    %773 = vmatmul.mubr.bf16.gmra.mrb[0].mxu0 %v299
    %v774 = vpop.f32.mrb[0].mxu0
    %v775 = vadd.f32 %v732, %v774
    %v776 = vpop.f32.mrb[0].mxu0
    %v777 = vadd.f32 %v734, %v776
    %v778 = vpop.f32.mrb[0].mxu0
    %v779 = vadd.f32 %v736, %v778
    %v780 = vpop.f32.mrb[0].mxu0
    %v781 = vadd.f32 %v738, %v780
    %782 = vdwg.mxu0
    %v783 = vmax.f32 %v775, 0.0
    %v784 = vmax.f32 %v777, 0.0
    %v785 = vmax.f32 %v779, 0.0
    %v786 = vmax.f32 %v781, 0.0
    %v787 = vpack.c.bf16 %v785, %v783
    %v788 = vpack.c.bf16 %v786, %v784
    %v789 = vld [vmem:[#allocation8] sm:$0xf]
    %v790 = vld [vmem:[#allocation8 + $0x4] sm:$0xf]
    %v791 = vld [vmem:[#allocation8 + $0x8] sm:$0xf]
    %v792 = vld [vmem:[#allocation8 + $0xc] sm:$0xf]
    %v793 = vld [vmem:[#allocation8 + $0x10] sm:$0xf]
    %v794 = vld [vmem:[#allocation8 + $0x14] sm:$0xf]
    %v795 = vld [vmem:[#allocation8 + $0x18] sm:$0xf]
    %v796 = vld [vmem:[#allocation8 + $0x1c] sm:$0xf]
    %v797 = vld [vmem:[#allocation8 + $0x20] sm:$0xf]
    %v798 = vld [vmem:[#allocation8 + $0x24] sm:$0xf]
    %v799 = vld [vmem:[#allocation8 + $0x28] sm:$0xf]
    %v800 = vld [vmem:[#allocation8 + $0x2c] sm:$0xf]
    %v801 = vld [vmem:[#allocation8 + $0x30] sm:$0xf]
    %v802 = vld [vmem:[#allocation8 + $0x34] sm:$0xf]
    %v803 = vld [vmem:[#allocation8 + $0x38] sm:$0xf]
    %v804 = vld [vmem:[#allocation8 + $0x3c] sm:$0xf]
    %v805 = vld [vmem:[#allocation8 + $0x40] sm:$0xf]
    %v806 = vld [vmem:[#allocation8 + $0x44] sm:$0xf]
    %v807 = vld [vmem:[#allocation8 + $0x48] sm:$0xf]
    %v808 = vld [vmem:[#allocation8 + $0x4c] sm:$0xf]
    %v809 = vld [vmem:[#allocation8 + $0x50] sm:$0xf]
    %v810 = vld [vmem:[#allocation8 + $0x54] sm:$0xf]
    %v811 = vld [vmem:[#allocation8 + $0x58] sm:$0xf]
    %v812 = vld [vmem:[#allocation8 + $0x5c] sm:$0xf]
    %v813 = vld [vmem:[#allocation8 + $0x60] sm:$0xf]
    %v814 = vld [vmem:[#allocation8 + $0x64] sm:$0xf]
    %v815 = vld [vmem:[#allocation8 + $0x68] sm:$0xf]
    %v816 = vld [vmem:[#allocation8 + $0x6c] sm:$0xf]
    %v817 = vld [vmem:[#allocation8 + $0x70] sm:$0xf]
    %v818 = vld [vmem:[#allocation8 + $0x74] sm:$0xf]
    %v819 = vld [vmem:[#allocation8 + $0x78] sm:$0xf]
    %v820 = vld [vmem:[#allocation8 + $0x7c] sm:$0xf]
    %v821 = vld [vmem:[%s6] sm:$0x1]
    %v823 = vlaneseq
    %v824 = vshrl.u32 %v823, 7
    %v825 = vsub.s32 0, %v824
    %v826 = vrot.slane %v821, %v825
    %v860 = vunpack.c.l.b16 %v789
    %v861 = vunpack.c.l.b16 %v790
    %v862 = vunpack.c.l.b16 %v791
    %v863 = vunpack.c.l.b16 %v792
    %v864 = vunpack.c.l.b16 %v793
    %v865 = vunpack.c.l.b16 %v794
    %v866 = vunpack.c.l.b16 %v795
    %v867 = vunpack.c.l.b16 %v796
    %v868 = vunpack.c.l.b16 %v797
    %v869 = vunpack.c.l.b16 %v798
    %v870 = vunpack.c.l.b16 %v799
    %v871 = vunpack.c.l.b16 %v800
    %v872 = vunpack.c.l.b16 %v801
    %v873 = vunpack.c.l.b16 %v802
    %v874 = vunpack.c.l.b16 %v803
    %v875 = vunpack.c.l.b16 %v804
    %v876 = vunpack.c.l.b16 %v805
    %v877 = vunpack.c.l.b16 %v806
    %v878 = vunpack.c.l.b16 %v807
    %v879 = vunpack.c.l.b16 %v808
    %v880 = vunpack.c.l.b16 %v809
    %v881 = vunpack.c.l.b16 %v810
    %v882 = vunpack.c.l.b16 %v811
    %v883 = vunpack.c.l.b16 %v812
    %v884 = vunpack.c.l.b16 %v813
    %v885 = vunpack.c.l.b16 %v814
    %v886 = vunpack.c.l.b16 %v815
    %v887 = vunpack.c.l.b16 %v816
    %v888 = vunpack.c.l.b16 %v817
    %v889 = vunpack.c.l.b16 %v818
    %v890 = vunpack.c.l.b16 %v819
    %v891 = vunpack.c.l.b16 %v820
    %v892 = vpack.c.b16 %v861, %v860
    %v893 = vpack.c.b16 %v863, %v862
    %v894 = vpack.c.b16 %v865, %v864
    %v895 = vpack.c.b16 %v867, %v866
    %v896 = vpack.c.b16 %v869, %v868
    %v897 = vpack.c.b16 %v871, %v870
    %v898 = vpack.c.b16 %v873, %v872
    %v899 = vpack.c.b16 %v875, %v874
    %v900 = vpack.c.b16 %v877, %v876
    %v901 = vpack.c.b16 %v879, %v878
    %v902 = vpack.c.b16 %v881, %v880
    %v903 = vpack.c.b16 %v883, %v882
    %v904 = vpack.c.b16 %v885, %v884
    %v905 = vpack.c.b16 %v887, %v886
    %v906 = vpack.c.b16 %v889, %v888
    %v907 = vpack.c.b16 %v891, %v890
    %924 = vmatprep.subr.bf16.mxu0 0
    %925 = vmatpush1.bf16.msra.mxu0 %v892
    %926 = vmatprep.subr.bf16.mxu0 0
    %927 = vmatpush1.bf16.msra.mxu0 %v893
    %928 = vmatprep.subr.bf16.mxu0 0
    %929 = vmatpush1.bf16.msra.mxu0 %v894
    %930 = vmatprep.subr.bf16.mxu0 0
    %931 = vmatpush1.bf16.msra.mxu0 %v895
    %932 = vmatprep.subr.bf16.mxu0 0
    %933 = vmatpush1.bf16.msra.mxu0 %v896
    %934 = vmatprep.subr.bf16.mxu0 0
    %935 = vmatpush1.bf16.msra.mxu0 %v897
    %936 = vmatprep.subr.bf16.mxu0 0
    %937 = vmatpush1.bf16.msra.mxu0 %v898
    %938 = vmatprep.subr.bf16.mxu0 0
    %939 = vmatpush1.bf16.msra.mxu0 %v899
    %940 = vmatprep.subr.bf16.mxu0 0
    %941 = vmatpush1.bf16.msra.mxu0 %v900
    %942 = vmatprep.subr.bf16.mxu0 0
    %943 = vmatpush1.bf16.msra.mxu0 %v901
    %944 = vmatprep.subr.bf16.mxu0 0
    %945 = vmatpush1.bf16.msra.mxu0 %v902
    %946 = vmatprep.subr.bf16.mxu0 0
    %947 = vmatpush1.bf16.msra.mxu0 %v903
    %948 = vmatprep.subr.bf16.mxu0 0
    %949 = vmatpush1.bf16.msra.mxu0 %v904
    %950 = vmatprep.subr.bf16.mxu0 0
    %951 = vmatpush1.bf16.msra.mxu0 %v905
    %952 = vmatprep.subr.bf16.mxu0 0
    %953 = vmatpush1.bf16.msra.mxu0 %v906
    %954 = vmatprep.subr.bf16.mxu0 0
    %955 = vmatpush1.bf16.msra.mxu0 %v907
    %956 = vmatprep.mubr.bf16.mxu0 %v788
    %957 = vmatmul.mubr.bf16.gmra.mrb[0].mxu0 %v787
    %v958 = vpop.f32.mrb[0].mxu0
    %v959 = vadd.f32 %v826, %v958
    %v960 = vpop.f32.mrb[0].mxu0
    %v961 = vpop.f32.mrb[0].mxu0
    %v962 = vadd.f32 %v826, %v961
    %v963 = vpop.f32.mrb[0].mxu0
    %964 = vdwg.mxu0
    %v965 = vmax.f32 %v959, 0.0
    %v966 = vmax.f32 %v962, 0.0
    %v967 = vpack.c.bf16 %v966, %v965
    %v968 = vld [vmem:[#allocation10] sm:$0xf]
    %v969 = vld [vmem:[#allocation10 + $0x4] sm:$0xf]
    %v970 = vld [vmem:[#allocation10 + $0x8] sm:$0xf]
    %v971 = vld [vmem:[#allocation10 + $0xc] sm:$0xf]
    %v972 = vld [vmem:[#allocation10 + $0x10] sm:$0xf]
    %v973 = vld [vmem:[#allocation10 + $0x14] sm:$0xf]
    %v974 = vld [vmem:[#allocation10 + $0x18] sm:$0xf]
    %v975 = vld [vmem:[#allocation10 + $0x1c] sm:$0xf]
    %v976 = vld [vmem:[#allocation10 + $0x20] sm:$0xf]
    %v977 = vld [vmem:[#allocation10 + $0x24] sm:$0xf]
    %v978 = vld [vmem:[#allocation10 + $0x28] sm:$0xf]
    %v979 = vld [vmem:[#allocation10 + $0x2c] sm:$0xf]
    %v980 = vld [vmem:[#allocation10 + $0x30] sm:$0xf]
    %v981 = vld [vmem:[#allocation10 + $0x34] sm:$0xf]
    %v982 = vld [vmem:[#allocation10 + $0x38] sm:$0xf]
    %v983 = vld [vmem:[#allocation10 + $0x3c] sm:$0xf]
    %v984 = vld [vmem:[%s8] sm:$0x1]
    %v986 = vlaneseq
    %v987 = vshrl.u32 %v986, 7
    %v988 = vsub.s32 0, %v987
    %v989 = vrot.slane %v984, %v988
    %v1007 = vunpack.c.l.b16 %v968
    %v1008 = vunpack.c.l.b16 %v969
    %v1009 = vunpack.c.l.b16 %v970
    %v1010 = vunpack.c.l.b16 %v971
    %v1011 = vunpack.c.l.b16 %v972
    %v1012 = vunpack.c.l.b16 %v973
    %v1013 = vunpack.c.l.b16 %v974
    %v1014 = vunpack.c.l.b16 %v975
    %v1015 = vunpack.c.l.b16 %v976
    %v1016 = vunpack.c.l.b16 %v977
    %v1017 = vunpack.c.l.b16 %v978
    %v1018 = vunpack.c.l.b16 %v979
    %v1019 = vunpack.c.l.b16 %v980
    %v1020 = vunpack.c.l.b16 %v981
    %v1021 = vunpack.c.l.b16 %v982
    %v1022 = vunpack.c.l.b16 %v983
    %v1023 = vpack.c.b16 %v1008, %v1007
    %v1024 = vpack.c.b16 %v1010, %v1009
    %v1025 = vpack.c.b16 %v1012, %v1011
    %v1026 = vpack.c.b16 %v1014, %v1013
    %v1027 = vpack.c.b16 %v1016, %v1015
    %v1028 = vpack.c.b16 %v1018, %v1017
    %v1029 = vpack.c.b16 %v1020, %v1019
    %v1030 = vpack.c.b16 %v1022, %v1021
    %1039 = vmatprep.subr.bf16.mxu0 0
    %1040 = vmatpush1.bf16.msra.mxu0 %v1023
    %1041 = vmatprep.subr.bf16.mxu0 0
    %1042 = vmatpush1.bf16.msra.mxu0 %v1024
    %1043 = vmatprep.subr.bf16.mxu0 0
    %1044 = vmatpush1.bf16.msra.mxu0 %v1025
    %1045 = vmatprep.subr.bf16.mxu0 0
    %1046 = vmatpush1.bf16.msra.mxu0 %v1026
    %1047 = vmatprep.subr.bf16.mxu0 0
    %1048 = vmatpush1.bf16.msra.mxu0 %v1027
    %1049 = vmatprep.subr.bf16.mxu0 0
    %1050 = vmatpush1.bf16.msra.mxu0 %v1028
    %1051 = vmatprep.subr.bf16.mxu0 0
    %1052 = vmatpush1.bf16.msra.mxu0 %v1029
    %1053 = vmatprep.subr.bf16.mxu0 0
    %1054 = vmatpush1.bf16.msra.mxu0 %v1030
    %1055 = vmatprep.subr.bf16.mxu0 0
    %1056 = vmatpush1.bf16.msra.mxu0 0
    %1057 = vmatprep.subr.bf16.mxu0 0
    %1058 = vmatpush1.bf16.msra.mxu0 0
    %1059 = vmatprep.subr.bf16.mxu0 0
    %1060 = vmatpush1.bf16.msra.mxu0 0
    %1061 = vmatprep.subr.bf16.mxu0 0
    %1062 = vmatpush1.bf16.msra.mxu0 0
    %1063 = vmatprep.subr.bf16.mxu0 0
    %1064 = vmatpush1.bf16.msra.mxu0 0
    %1065 = vmatprep.subr.bf16.mxu0 0
    %1066 = vmatpush1.bf16.msra.mxu0 0
    %1067 = vmatprep.subr.bf16.mxu0 0
    %1068 = vmatpush1.bf16.msra.mxu0 0
    %1069 = vmatprep.subr.bf16.mxu0 0
    %1070 = vmatpush1.bf16.msra.mxu0 0
    %1071 = vmatprep.mubr.bf16.mxu0 0
    %1072 = vmatmul.mubr.bf16.gmra.mrb[0].mxu0 %v967
    %v1073 = vpop.f32.mrb[0].mxu0
    %v1074 = vadd.f32 %v989, %v1073
    %v1075 = vpop.f32.mrb[0].mxu0
    %v1076 = vpop.f32.mrb[0].mxu0
    %v1077 = vadd.f32 %v989, %v1076
    %v1078 = vpop.f32.mrb[0].mxu0
    %1079 = vdwg.mxu0
    %v1080 = vmax.f32 %v1074, 0.0
    %v1081 = vmax.f32 %v1077, 0.0
    %v1082 = vpack.c.bf16 %v1081, %v1080
    %v1083 = vld [vmem:[#allocation11] sm:$0xf]
    %v1084 = vld [vmem:[#allocation11 + $0x4] sm:$0xf]
    %v1085 = vld [vmem:[#allocation11 + $0x8] sm:$0xf]
    %v1086 = vld [vmem:[#allocation11 + $0xc] sm:$0xf]
    %v1087 = vld [vmem:[#allocation11 + $0x10] sm:$0xf]
    %v1088 = vld [vmem:[#allocation11 + $0x14] sm:$0xf]
    %v1089 = vld [vmem:[#allocation11 + $0x18] sm:$0xf]
    %v1090 = vld [vmem:[#allocation11 + $0x1c] sm:$0xf]
    %v1091 = vld [vmem:[#allocation11 + $0x20] sm:$0xf]
    %v1092 = vld [vmem:[#allocation11 + $0x24] sm:$0xf]
    %v1093 = vld [vmem:[#allocation11 + $0x28] sm:$0xf]
    %v1094 = vld [vmem:[#allocation11 + $0x2c] sm:$0xf]
    %v1095 = vld [vmem:[#allocation11 + $0x30] sm:$0xf]
    %v1096 = vld [vmem:[#allocation11 + $0x34] sm:$0xf]
    %v1097 = vld [vmem:[#allocation11 + $0x38] sm:$0xf]
    %v1098 = vld [vmem:[#allocation11 + $0x3c] sm:$0xf]
    %v1099 = vld [vmem:[%s10] sm:$0x1]
    %v1101 = vlaneseq
    %v1102 = vshrl.u32 %v1101, 7
    %v1103 = vsub.s32 0, %v1102
    %v1104 = vrot.slane %v1099, %v1103
    %v1122 = vunpack.c.l.b16 %v1083
    %v1123 = vunpack.c.l.b16 %v1084
    %v1124 = vunpack.c.l.b16 %v1085
    %v1125 = vunpack.c.l.b16 %v1086
    %v1126 = vunpack.c.l.b16 %v1087
    %v1127 = vunpack.c.l.b16 %v1088
    %v1128 = vunpack.c.l.b16 %v1089
    %v1129 = vunpack.c.l.b16 %v1090
    %v1130 = vunpack.c.l.b16 %v1091
    %v1131 = vunpack.c.l.b16 %v1092
    %v1132 = vunpack.c.l.b16 %v1093
    %v1133 = vunpack.c.l.b16 %v1094
    %v1134 = vunpack.c.l.b16 %v1095
    %v1135 = vunpack.c.l.b16 %v1096
    %v1136 = vunpack.c.l.b16 %v1097
    %v1137 = vunpack.c.l.b16 %v1098
    %v1138 = vpack.c.b16 %v1123, %v1122
    %v1139 = vpack.c.b16 %v1125, %v1124
    %v1140 = vpack.c.b16 %v1127, %v1126
    %v1141 = vpack.c.b16 %v1129, %v1128
    %v1142 = vpack.c.b16 %v1131, %v1130
    %v1143 = vpack.c.b16 %v1133, %v1132
    %v1144 = vpack.c.b16 %v1135, %v1134
    %v1145 = vpack.c.b16 %v1137, %v1136
    %1154 = vmatprep.subr.bf16.mxu0 0
    %1155 = vmatpush1.bf16.msra.mxu0 %v1138
    %1156 = vmatprep.subr.bf16.mxu0 0
    %1157 = vmatpush1.bf16.msra.mxu0 %v1139
    %1158 = vmatprep.subr.bf16.mxu0 0
    %1159 = vmatpush1.bf16.msra.mxu0 %v1140
    %1160 = vmatprep.subr.bf16.mxu0 0
    %1161 = vmatpush1.bf16.msra.mxu0 %v1141
    %1162 = vmatprep.subr.bf16.mxu0 0
    %1163 = vmatpush1.bf16.msra.mxu0 %v1142
    %1164 = vmatprep.subr.bf16.mxu0 0
    %1165 = vmatpush1.bf16.msra.mxu0 %v1143
    %1166 = vmatprep.subr.bf16.mxu0 0
    %1167 = vmatpush1.bf16.msra.mxu0 %v1144
    %1168 = vmatprep.subr.bf16.mxu0 0
    %1169 = vmatpush1.bf16.msra.mxu0 %v1145
    %1170 = vmatprep.subr.bf16.mxu0 0
    %1171 = vmatpush1.bf16.msra.mxu0 0
    %1172 = vmatprep.subr.bf16.mxu0 0
    %1173 = vmatpush1.bf16.msra.mxu0 0
    %1174 = vmatprep.subr.bf16.mxu0 0
    %1175 = vmatpush1.bf16.msra.mxu0 0
    %1176 = vmatprep.subr.bf16.mxu0 0
    %1177 = vmatpush1.bf16.msra.mxu0 0
    %1178 = vmatprep.subr.bf16.mxu0 0
    %1179 = vmatpush1.bf16.msra.mxu0 0
    %1180 = vmatprep.subr.bf16.mxu0 0
    %1181 = vmatpush1.bf16.msra.mxu0 0
    %1182 = vmatprep.subr.bf16.mxu0 0
    %1183 = vmatpush1.bf16.msra.mxu0 0
    %1184 = vmatprep.subr.bf16.mxu0 0
    %1185 = vmatpush1.bf16.msra.mxu0 0
    %1186 = vmatprep.mubr.bf16.mxu0 0
    %1187 = vmatmul.mubr.bf16.gmra.mrb[0].mxu0 %v1082
    %v1188 = vpop.f32.mrb[0].mxu0
    %v1189 = vadd.f32 %v1104, %v1188
    %v1190 = vpop.f32.mrb[0].mxu0
    %v1191 = vpop.f32.mrb[0].mxu0
    %v1192 = vadd.f32 %v1104, %v1191
    %v1193 = vpop.f32.mrb[0].mxu0
    %1194 = vdwg.mxu0
    %1195 = vmax.xlane.f32.xlu0 %v1189
    %v1196 = vpop.xlane.xlu0 %1195
    %1197 = vmax.xlane.f32.xlu0 %v1192
    %v1198 = vpop.xlane.xlu0 %1197
    %v1199 = vsub.f32 %v1189, %v1196
    %v1200 = vsub.f32 %v1192, %v1198
    %v1201 = vmul.f32 %v1199, 1.442695
    %v1202 = vpow.pop %v1201
    %v1203 = vmul.f32 %v1200, 1.442695
    %v1204 = vpow.pop %v1203
    %1205 = vadd.xlane.f32.xlu0 %v1202
    %v1206 = vpop.xlane.xlu0 %1205
    %1207 = vadd.xlane.f32.xlu0 %v1204
    %v1208 = vpop.xlane.xlu0 %1207
    %v1209 = vrcp.pop %v1206
    %v1210 = vrcp.pop %v1208
    %v1211 = vmul.f32 %v1202, %v1209
    %v1212 = vmul.f32 %v1204, %v1210
    %v1213 = vpack.c.bf16 %v1212, %v1211
    %v1215 = vunpack.c.l.b16 %v1213
    %v1216 = vunpack.c.h.b16 %v1213
    %v1217 = vpack.c.b16 %v1215, %v1215
    %v1218 = vpack.c.b16 %v1216, %v1216
    %1221 = vst [vmem:[#allocation13] sm:$0xf] %v1217
    %1222 = vst [vmem:[#allocation13 + $0x4] sm:$0xf] %v1218
    // Predicated region
    $region70: #{tpu_custom_call.1} parent=1 // pred_check
      _
    $region71: #{tpu_custom_call.1} parent=1 // pred_check_branch
      %1224 = sbr.rel (0) target = $region73
    $region72: #{tpu_custom_call.1} parent=1 // pred_region
      %s1226 = ssub.s32 128, 128
      %1227 = vsyncadd [#allocation4], %s1226
      %s1228 = sshll.u32 [#allocation13], 4
      %s1229 = int_to_ptr.vmem [resolvable:$true] %s1228
      %1234 = dma.vmem_to_hbm [thread:$0]  %s1229, 128, %s11, [#allocation4], 64, 64, 4
    $region73: #{tpu_custom_call.1} parent=1 // pred_fallthru
      _
    // Predicated region
    $region74: #{tpu_custom_call.1} parent=1 // pred_check
      _
    $region75: #{tpu_custom_call.1} parent=1 // pred_check_branch
      %1236 = sbr.rel (0) target = $region77
    $region76: #{tpu_custom_call.1} parent=1 // pred_region
      %1237 = dma.done [#allocation4], 128
    $region77: #{tpu_custom_call.1} parent=1 // pred_fallthru
      _
    %1238 = vsyncpa [#allocation3], 1
    %1239 = vsyncpa [#allocation6], 1
    %1240 = vsyncpa [#allocation9], 1
    %1241 = vsyncpa [#allocation12], 1
    %1242 = vsyncpa [#allocation4], 1

</llo_original>
